<compile_context>
chip_gen: v6e
topology: v6e:2x2x1
jax: 0.10.0
libtpu: 0.0.40
codegen_flags: <defaults>
</compile_context>

<pallas_src>
import functools

import jax
import jax.numpy as jnp
from jax.experimental import pallas as pl
from jax.experimental.pallas import tpu as pltpu


_K_COLLAPSE_MAX = 2048          # collapse the K grid axis when Din_p <= this
_W_RESIDENT_BYTES = 6 * 1024 * 1024   # keep whole W in VMEM below this size
_VMEM_LIMIT_BYTES = 32 * 1024 * 1024


def _round_up(x, m):
    return (x + m - 1) // m * m


def _pick_tile(dim, candidates):
    for c in candidates:
        if c <= dim and dim % c == 0:
            return c
    return dim  # full extent always satisfies the (8,128) block rule (128-multiple)


# ---------------------------------------------------------------------------
# Kernels
# ---------------------------------------------------------------------------
def basic_block_kernel_fused(x_ref, w_ref, scale_ref, shift_ref, o_ref):
    # Collapsed-K path: one MXU pass per (i, j) tile, epilogue fused.
    # x_ref:     (tm, tk)  bf16
    # w_ref:     (tk, tn)  bf16   (plain W^T, unscaled)
    # scale_ref: (1,  tn)  f32    gamma / sqrt(var + eps)
    # shift_ref: (1,  tn)  f32    (bias - mean)*scale + beta
    acc = jnp.dot(x_ref[...], w_ref[...], preferred_element_type=jnp.float32)
    y = acc * scale_ref[...] + shift_ref[...]
    o_ref[...] = jnp.maximum(y, 0.0).astype(o_ref.dtype)   # ReLU; Dropout=identity (eval)


def basic_block_kernel_ktiled(x_ref, w_ref, scale_ref, shift_ref, o_ref, acc_ref):
    # Fallback path for very large Din: accumulate over the K grid axis.
    k = pl.program_id(2)

    @pl.when(k == 0)
    def _():
        acc_ref[...] = jnp.zeros_like(acc_ref)

    acc_ref[...] += jnp.dot(x_ref[...], w_ref[...],
                            preferred_element_type=jnp.float32)

    @pl.when(k == pl.num_programs(2) - 1)
    def _():
        y = acc_ref[...] * scale_ref[...] + shift_ref[...]
        o_ref[...] = jnp.maximum(y, 0.0).astype(o_ref.dtype)


# ---------------------------------------------------------------------------
# One-time parameter prep (outside the per-call hot path)
# ---------------------------------------------------------------------------
def fuse_basic_block_params(weight, bias, gamma, beta, running_mean, running_var,
                            eps=1e-5):
    """weight: (Dout, Din) as in nn.Linear.

    Returns (W^T padded bf16 (Din_p, Dout_p), scale (1, Dout_p) f32,
             shift (1, Dout_p) f32, Dout).
    W is kept unscaled in bf16; the f32 BN scale is applied in the kernel
    epilogue to avoid amplifying bf16 quantization error when running_var is
    small or gamma spans orders of magnitude.
    """
    Dout, Din = weight.shape
    scale = (gamma / jnp.sqrt(running_var + eps)).astype(jnp.float32)      # (Dout,)
    shift = ((bias - running_mean) * scale + beta).astype(jnp.float32)     # (Dout,)
    w_t = weight.T.astype(jnp.bfloat16)                                    # (Din, Dout)

    Din_p = _round_up(Din, 128)
    Dout_p = _round_up(Dout, 128)
    w_pad = jnp.zeros((Din_p, Dout_p), jnp.bfloat16).at[:Din, :Dout].set(w_t)
    scale_pad = jnp.zeros((1, Dout_p), jnp.float32).at[0, :Dout].set(scale)
    shift_pad = jnp.zeros((1, Dout_p), jnp.float32).at[0, :Dout].set(shift)
    return w_pad, scale_pad, shift_pad, Dout


# ---------------------------------------------------------------------------
# Forward
# ---------------------------------------------------------------------------
@functools.partial(jax.jit, static_argnames=("out_dim",))
def basic_block_forward(x, w_t, scale, shift, out_dim):
    """x: (B, Din) f32; w_t: (Din_p, Dout_p) bf16; scale/shift: (1, Dout_p) f32."""
    B, Din = x.shape
    Din_p, Dout_p = w_t.shape

    # M tiling: pad B up to the tile so odd batches never fall back to tiny tm.
    if B <= 256:
        tm = max(16, _round_up(B, 16))   # single M block; >=16 for bf16 sublane packing
    else:
        tm = 256
    B_p = _round_up(B, tm)
    m_blocks = B_p // tm

    # Single fused cast + zero-pad of x (one HBM pass).
    x_bf = x.astype(jnp.bfloat16)
    if (B_p, Din_p) != (B, Din):
        x_bf = jnp.pad(x_bf, ((0, B_p - B), (0, Din_p - Din)))

    cost = pl.CostEstimate(
        flops=2 * B_p * Din_p * Dout_p,
        transcendentals=0,
        bytes_accessed=(B_p * Din_p * 2 + Din_p * Dout_p * 2
                        + 2 * Dout_p * 4 + B_p * Dout_p * 4),
    )
    out_shape = jax.ShapeDtypeStruct((B_p, Dout_p), jnp.float32)

    if Din_p <= _K_COLLAPSE_MAX:
        # -------- collapsed-K path (typical MLP sizes) --------
        if Din_p * Dout_p * 2 <= _W_RESIDENT_BYTES:
            tn = Dout_p
            # v7x dual-TC: guarantee >=2 parallel blocks when the M grid is 1.
            if m_blocks == 1 and Dout_p % 256 == 0:
                tn = Dout_p // 2
        else:
            tn = _pick_tile(Dout_p, (1024, 768, 512, 384, 256))
        grid = (m_blocks, Dout_p // tn)

        out_padded = pl.pallas_call(
            basic_block_kernel_fused,
            out_shape=out_shape,
            grid_spec=pltpu.PrefetchScalarGridSpec(
                num_scalar_prefetch=0,
                grid=grid,
                in_specs=[
                    pl.BlockSpec((tm, Din_p), lambda i, j: (i, 0)),
                    pl.BlockSpec((Din_p, tn), lambda i, j: (0, j)),   # W read once per j
                    pl.BlockSpec((1, tn), lambda i, j: (0, j)),
                    pl.BlockSpec((1, tn), lambda i, j: (0, j)),
                ],
                out_specs=pl.BlockSpec((tm, tn), lambda i, j: (i, j)),
            ),
            compiler_params=pltpu.CompilerParams(
                dimension_semantics=("parallel", "parallel"),
                vmem_limit_bytes=_VMEM_LIMIT_BYTES),
            cost_estimate=cost,
        )(x_bf, w_t, scale, shift)
    else:
        # -------- fallback: very large Din, accumulate over K grid axis --------
        tk = _pick_tile(Din_p, (1024, 512, 256))
        tn = _pick_tile(Dout_p, (512, 256))
        grid = (m_blocks, Dout_p // tn, Din_p // tk)

        out_padded = pl.pallas_call(
            basic_block_kernel_ktiled,
            out_shape=out_shape,
            grid_spec=pltpu.PrefetchScalarGridSpec(
                num_scalar_prefetch=0,
                grid=grid,
                in_specs=[
                    pl.BlockSpec((tm, tk), lambda i, j, k: (i, k)),
                    pl.BlockSpec((tk, tn), lambda i, j, k: (k, j)),
                    pl.BlockSpec((1, tn), lambda i, j, k: (0, j)),
                    pl.BlockSpec((1, tn), lambda i, j, k: (0, j)),
                ],
                out_specs=pl.BlockSpec((tm, tn), lambda i, j, k: (i, j)),
                scratch_shapes=[pltpu.VMEM((tm, tn), jnp.float32)],
            ),
            compiler_params=pltpu.CompilerParams(
                dimension_semantics=("parallel", "parallel", "arbitrary"),
                vmem_limit_bytes=_VMEM_LIMIT_BYTES),
            cost_estimate=cost,
        )(x_bf, w_t, scale, shift)

    return out_padded[:B, :out_dim]


if __name__ == "__main__":
    # Small shapes consistent with the module: batch=8, input_dim=32, output_dim=64.
    B, Din, Dout = 8, 32, 64
    eps = 1e-5
    key = jax.random.PRNGKey(0)
    k_x, k_w, k_b = jax.random.split(key, 3)

    x = jax.random.normal(k_x, (B, Din), dtype=jnp.float32)

    # Deterministic parameter init (shapes from nn.Linear / nn.BatchNorm1d).
    bound = 1.0 / (Din ** 0.5)
    weight = jax.random.uniform(k_w, (Dout, Din), minval=-bound, maxval=bound,
                                dtype=jnp.float32)
    bias = jax.random.uniform(k_b, (Dout,), minval=-bound, maxval=bound,
                              dtype=jnp.float32)
    gamma = jnp.ones((Dout,), jnp.float32)          # BN weight
    beta = jnp.zeros((Dout,), jnp.float32)          # BN bias
    running_mean = jnp.zeros((Dout,), jnp.float32)  # BN running_mean (init)
    running_var = jnp.ones((Dout,), jnp.float32)    # BN running_var (init)

    # One-time parameter fusion (transpose, pad, bf16 W, f32 scale/shift).
    w_t, scale, shift, out_dim = fuse_basic_block_params(
        weight, bias, gamma, beta, running_mean, running_var, eps=eps)

    out = basic_block_forward(x, w_t, scale, shift, out_dim)
    out = jax.block_until_ready(out)
    assert out.shape == (B, Dout)

    # Reference 1: exact eval-mode PyTorch semantics in f32 (loose tol: bf16 matmul inputs).
    scale_ref = gamma / jnp.sqrt(running_var + eps)
    ref_f32 = jnp.maximum((x @ weight.T + bias - running_mean) * scale_ref + beta, 0.0)
    assert jnp.allclose(out, ref_f32, atol=3e-2, rtol=3e-2), "f32 reference mismatch"

    # Reference 2: same bf16-cast operands as the kernel (tight tol).
    x_bf32 = x.astype(jnp.bfloat16).astype(jnp.float32)
    w_bf32 = weight.T.astype(jnp.bfloat16).astype(jnp.float32)
    shift_ref = (bias - running_mean) * scale_ref + beta
    ref_bf = jnp.maximum((x_bf32 @ w_bf32) * scale_ref + shift_ref, 0.0)
    assert jnp.allclose(out, ref_bf, atol=1e-3, rtol=1e-3), "bf16 reference mismatch"

    print("KERNEL_OK")
</pallas_src>

<mosaic_0001>
module attributes {stable_mosaic.version = 11 : i64} {
  func.func @basic_block_kernel_fused(%arg0: i32, %arg1: i32, %arg2: memref<16x128xbf16, #tpu.memory_space<vmem>>, %arg3: memref<128x128xbf16, #tpu.memory_space<vmem>>, %arg4: memref<1x128xf32, #tpu.memory_space<vmem>>, %arg5: memref<1x128xf32, #tpu.memory_space<vmem>>, %arg6: memref<16x128xf32, #tpu.memory_space<vmem>>) attributes {dimension_semantics = [#tpu.dimension_semantics<parallel>, #tpu.dimension_semantics<parallel>], iteration_bounds = array<i64: 1, 1>, scalar_prefetch = 0 : i64, scratch_operands = 0 : i64, tpu.core_type = #tpu.core_type<tc>, window_params = [{transform_indices = @transform_0, window_bounds = array<i64: 16, 128>}, {transform_indices = @transform_1, window_bounds = array<i64: 128, 128>}, {transform_indices = @transform_2, window_bounds = array<i64: 1, 128>}, {transform_indices = @transform_3, window_bounds = array<i64: 1, 128>}, {transform_indices = @transform_4, window_bounds = array<i64: 16, 128>}]} {
    %c0 = arith.constant 0 : index
    %c0_0 = arith.constant 0 : index
    %0 = vector.load %arg2[%c0, %c0_0] : memref<16x128xbf16, #tpu.memory_space<vmem>>, vector<16x128xbf16>
    %c0_1 = arith.constant 0 : index
    %c0_2 = arith.constant 0 : index
    %1 = vector.load %arg3[%c0_1, %c0_2] : memref<128x128xbf16, #tpu.memory_space<vmem>>, vector<128x128xbf16>
    %cst = arith.constant dense<0.000000e+00> : vector<16x128xf32>
    %2 = tpu.matmul %0, %1, %cst {dimension_numbers = #tpu.dot_dimension_numbers<[1], [0], [0], [1], [0, 0, 1, 1], [], []>} : vector<16x128xbf16>, vector<128x128xbf16>, vector<16x128xf32> -> vector<16x128xf32>
    %c0_3 = arith.constant 0 : index
    %c0_4 = arith.constant 0 : index
    %3 = vector.load %arg4[%c0_3, %c0_4] : memref<1x128xf32, #tpu.memory_space<vmem>>, vector<1x128xf32>
    %4 = vector.broadcast %3 : vector<1x128xf32> to vector<16x128xf32>
    %5 = arith.mulf %2, %4 : vector<16x128xf32>
    %c0_5 = arith.constant 0 : index
    %c0_6 = arith.constant 0 : index
    %6 = vector.load %arg5[%c0_5, %c0_6] : memref<1x128xf32, #tpu.memory_space<vmem>>, vector<1x128xf32>
    %7 = vector.broadcast %6 : vector<1x128xf32> to vector<16x128xf32>
    %8 = arith.addf %5, %7 : vector<16x128xf32>
    %cst_7 = arith.constant 0.000000e+00 : f32
    %9 = vector.broadcast %cst_7 : f32 to vector<16x128xf32>
    %10 = arith.maximumf %8, %9 : vector<16x128xf32>
    %c0_8 = arith.constant 0 : index
    %c0_9 = arith.constant 0 : index
    %11 = vector.load %arg6[%c0_8, %c0_9] : memref<16x128xf32, #tpu.memory_space<vmem>>, vector<16x128xf32>
    tpu.vector_store %arg6[%c0_8, %c0_9], %10 {strides = array<i32>} : memref<16x128xf32, #tpu.memory_space<vmem>>, vector<16x128xf32>,
    return
  }
  func.func @transform_0(%arg0: i32, %arg1: i32) -> (i32, i32) {
    %c0_i32 = arith.constant 0 : i32
    %c0_i32_0 = arith.constant 0 : i32
    return %arg0, %c0_i32 : i32, i32
  }
  func.func @transform_1(%arg0: i32, %arg1: i32) -> (i32, i32) {
    %c0_i32 = arith.constant 0 : i32
    %c0_i32_0 = arith.constant 0 : i32
    return %c0_i32, %arg1 : i32, i32
  }
  func.func @transform_2(%arg0: i32, %arg1: i32) -> (i32, i32) {
    %c0_i32 = arith.constant 0 : i32
    %c0_i32_0 = arith.constant 0 : i32
    return %c0_i32, %arg1 : i32, i32
  }
  func.func @transform_3(%arg0: i32, %arg1: i32) -> (i32, i32) {
    %c0_i32 = arith.constant 0 : i32
    %c0_i32_0 = arith.constant 0 : i32
    return %c0_i32, %arg1 : i32, i32
  }
  func.func @transform_4(%arg0: i32, %arg1: i32) -> (i32, i32) {
    %c0_i32 = arith.constant 0 : i32
    return %arg0, %arg1 : i32, i32
  }
}

</mosaic_0001>

<llo_original>
// kernel: basic_block_forward.1
$region0: #{basic_block_forward.1}
  #allocation0 [shape = 'u32[]', space=smem, size = 0x4, offset = 0x4, fixed_abs, tag = 'smem constant byte address 0x4 - core index']
  #allocation1 [shape = 'u32[144,128]{1,0:T(1,128)}', space=vmem, size = 0x12000, scoped, tag = 'internal scratch']
  %s0 = inlined_call_operand.vmem [shape: bf16[16,128], index: 0, kind: input, shape index: {}]
  %s1 = inlined_call_operand.hbm [shape: bf16[128,128], index: 1, kind: input, shape index: {}]
  %s2 = inlined_call_operand.vmem [shape: f32[1,128], index: 2, kind: input, shape index: {}]
  %s3 = inlined_call_operand.vmem [shape: f32[1,128], index: 3, kind: input, shape index: {}]
  %s4 = inlined_call_operand.vmem [shape: f32[16,128], index: 4, kind: output, shape index: {}]
  %s5 = sld [smem:[#allocation0]]
  $region30: #{basic_block_forward.1} parent=0
    _
  %s7 = ssub.s32 1, %s5
  %s8 = scalar_select 0, %s7, %s5
  $region1: #{basic_block_forward.1} parent=0
    #allocation2 [shape = 'u8[32768]{0}', space=vmem, size = 0x8000, scoped, tag = 'input window, operand 1, single buffered']
    #allocation3 [shape = 's32[1]{0}', space=sflag, size = 0x4, scoped, tag = 'scoped memory for basic_block_forward.1']
    %9 = vsyncpa [#allocation3], 0
    // Predicated region
    $region2: #{basic_block_forward.1} parent=1 // pred_check
      _
    $region3: #{basic_block_forward.1} parent=1 // pred_check_branch
      %11 = sbr.rel (0) target = $region5
    $region4: #{basic_block_forward.1} parent=1 // pred_region
      _
    $region5: #{basic_block_forward.1} parent=1 // pred_fallthru
      _
    // Predicated region
    $region6: #{basic_block_forward.1} parent=1 // pred_check
      _
    $region7: #{basic_block_forward.1} parent=1 // pred_check_branch
      %13 = sbr.rel (0) target = $region9
    $region8: #{basic_block_forward.1} parent=1 // pred_region
      %s15 = ssub.s32 1024, 1024
      %16 = vsyncadd [#allocation3], %s15
      %s17 = sshll.u32 [#allocation2], 4
      %s18 = int_to_ptr.vmem [resolvable:$true] %s17
      %23 = dma.hbm_to_vmem [thread:$0]  %s1, 1024, %s18, [#allocation3], 64, 64, 4
    $region9: #{basic_block_forward.1} parent=1 // pred_fallthru
      _
    // Predicated region
    $region10: #{basic_block_forward.1} parent=1 // pred_check
      _
    $region11: #{basic_block_forward.1} parent=1 // pred_check_branch
      %25 = sbr.rel (0) target = $region13
    $region12: #{basic_block_forward.1} parent=1 // pred_region
      _
    $region13: #{basic_block_forward.1} parent=1 // pred_fallthru
      _
    // Predicated region
    $region14: #{basic_block_forward.1} parent=1 // pred_check
      _
    $region15: #{basic_block_forward.1} parent=1 // pred_check_branch
      %27 = sbr.rel (0) target = $region17
    $region16: #{basic_block_forward.1} parent=1 // pred_region
      _
    $region17: #{basic_block_forward.1} parent=1 // pred_fallthru
      _
    // Predicated region
    $region18: #{basic_block_forward.1} parent=1 // pred_check
      _
    $region19: #{basic_block_forward.1} parent=1 // pred_check_branch
      %29 = sbr.rel (0) target = $region21
    $region20: #{basic_block_forward.1} parent=1 // pred_region
      %30 = dma.done [#allocation3], 1024
    $region21: #{basic_block_forward.1} parent=1 // pred_fallthru
      _
    %v32 = vld [vmem:[%s0] sm:$0xf]
    %v33 = vld [vmem:[%s0 + $0x4] sm:$0xf]
    %v34 = vld [vmem:[#allocation2] sm:$0xf]
    %v35 = vld [vmem:[#allocation2 + $0x4] sm:$0xf]
    %v36 = vld [vmem:[#allocation2 + $0x8] sm:$0xf]
    %v37 = vld [vmem:[#allocation2 + $0xc] sm:$0xf]
    %v38 = vld [vmem:[#allocation2 + $0x10] sm:$0xf]
    %v39 = vld [vmem:[#allocation2 + $0x14] sm:$0xf]
    %v40 = vld [vmem:[#allocation2 + $0x18] sm:$0xf]
    %v41 = vld [vmem:[#allocation2 + $0x1c] sm:$0xf]
    %v42 = vld [vmem:[#allocation2 + $0x20] sm:$0xf]
    %v43 = vld [vmem:[#allocation2 + $0x24] sm:$0xf]
    %v44 = vld [vmem:[#allocation2 + $0x28] sm:$0xf]
    %v45 = vld [vmem:[#allocation2 + $0x2c] sm:$0xf]
    %v46 = vld [vmem:[#allocation2 + $0x30] sm:$0xf]
    %v47 = vld [vmem:[#allocation2 + $0x34] sm:$0xf]
    %v48 = vld [vmem:[#allocation2 + $0x38] sm:$0xf]
    %v49 = vld [vmem:[#allocation2 + $0x3c] sm:$0xf]
    %v52 = vunpack.c.l.b16 %v32
    %v53 = vunpack.c.l.b16 %v33
    %v54 = vpack.c.b16 %v53, %v52
    %v72 = vunpack.c.l.b16 %v34
    %v73 = vunpack.c.l.b16 %v35
    %v74 = vunpack.c.l.b16 %v36
    %v75 = vunpack.c.l.b16 %v37
    %v76 = vunpack.c.l.b16 %v38
    %v77 = vunpack.c.l.b16 %v39
    %v78 = vunpack.c.l.b16 %v40
    %v79 = vunpack.c.l.b16 %v41
    %v80 = vunpack.c.l.b16 %v42
    %v81 = vunpack.c.l.b16 %v43
    %v82 = vunpack.c.l.b16 %v44
    %v83 = vunpack.c.l.b16 %v45
    %v84 = vunpack.c.l.b16 %v46
    %v85 = vunpack.c.l.b16 %v47
    %v86 = vunpack.c.l.b16 %v48
    %v87 = vunpack.c.l.b16 %v49
    %v88 = vpack.c.b16 %v73, %v72
    %v89 = vpack.c.b16 %v75, %v74
    %v90 = vpack.c.b16 %v77, %v76
    %v91 = vpack.c.b16 %v79, %v78
    %v92 = vpack.c.b16 %v81, %v80
    %v93 = vpack.c.b16 %v83, %v82
    %v94 = vpack.c.b16 %v85, %v84
    %v95 = vpack.c.b16 %v87, %v86
    %104 = vmatprep.subr.bf16.mxu0 0
    %105 = vmatpush1.bf16.msra.mxu0 %v95
    %106 = vmatprep.subr.bf16.mxu0 0
    %107 = vmatpush1.bf16.msra.mxu0 %v94
    %108 = vmatprep.subr.bf16.mxu0 0
    %109 = vmatpush1.bf16.msra.mxu0 %v93
    %110 = vmatprep.subr.bf16.mxu0 0
    %111 = vmatpush1.bf16.msra.mxu0 %v92
    %112 = vmatprep.subr.bf16.mxu0 0
    %113 = vmatpush1.bf16.msra.mxu0 %v91
    %114 = vmatprep.subr.bf16.mxu0 0
    %115 = vmatpush1.bf16.msra.mxu0 %v90
    %116 = vmatprep.subr.bf16.mxu0 0
    %117 = vmatpush1.bf16.msra.mxu0 %v89
    %118 = vmatprep.subr.bf16.mxu0 0
    %119 = vmatpush1.bf16.msra.mxu0 %v88
    %120 = vmatprep.subr.bf16.mxu0 0
    %121 = vmatpush2.bf16.msra.mxu0 0
    %122 = vmatprep.subr.bf16.mxu0 0
    %123 = vmatpush2.bf16.msra.mxu0 0
    %124 = vmatprep.subr.bf16.mxu0 0
    %125 = vmatpush2.bf16.msra.mxu0 0
    %126 = vmatprep.subr.bf16.mxu0 0
    %127 = vmatpush2.bf16.msra.mxu0 0
    %128 = vmatprep.subr.bf16.mxu0 0
    %129 = vmatpush2.bf16.msra.mxu0 0
    %130 = vmatprep.subr.bf16.mxu0 0
    %131 = vmatpush2.bf16.msra.mxu0 0
    %132 = vmatprep.subr.bf16.mxu0 0
    %133 = vmatpush2.bf16.msra.mxu0 0
    %134 = vmatprep.subr.bf16.mxu0 0
    %135 = vmatpush2.bf16.msra.mxu0 0
    %136 = vmatprep.mubr.bf16.mxu0 0
    %137 = vmatmul.mubr.bf16.gmra.mxu0 %v54
    %v138 = vpop.f32.mrf.mxu0
    %v139 = vadd.f32 0.0, %v138
    %v140 = vpop.f32.mrf.mxu0
    %v141 = vpop.f32.mrf.mxu0
    %v142 = vadd.f32 0.0, %v141
    %v143 = vpop.f32.mrf.mxu0
    %144 = vdwg.mxu0
    %v145 = vld [vmem:[%s2] sm:$0x1]
    %v147 = vlaneseq
    %v148 = vshrl.u32 %v147, 7
    %v149 = vsub.s32 0, %v148
    %v150 = vrot.slane %v145, %v149
    %v152 = vmul.f32 %v139, %v150
    %v153 = vmul.f32 %v142, %v150
    %v154 = vld [vmem:[%s3] sm:$0x1]
    %v156 = vlaneseq
    %v157 = vshrl.u32 %v156, 7
    %v158 = vsub.s32 0, %v157
    %v159 = vrot.slane %v154, %v158
    %v161 = vadd.f32 %v152, %v159
    %v162 = vadd.f32 %v153, %v159
    %v163 = vmax.f32 %v161, 0.0
    %v164 = vmax.f32 %v162, 0.0
    %165 = vst [vmem:[%s4] sm:$0xff] %v163
    %166 = vst [vmem:[%s4 + $0x8] sm:$0xff] %v164
    // Predicated region
    $region22: #{basic_block_forward.1} parent=1 // pred_check
      _
    $region23: #{basic_block_forward.1} parent=1 // pred_check_branch
      %168 = sbr.rel (0) target = $region25
    $region24: #{basic_block_forward.1} parent=1 // pred_region
      _
    $region25: #{basic_block_forward.1} parent=1 // pred_fallthru
      _
    // Predicated region
    $region26: #{basic_block_forward.1} parent=1 // pred_check
      _
    $region27: #{basic_block_forward.1} parent=1 // pred_check_branch
      %170 = sbr.rel (0) target = $region29
    $region28: #{basic_block_forward.1} parent=1 // pred_region
      _
    $region29: #{basic_block_forward.1} parent=1 // pred_fallthru
      _
    %171 = vsyncpa [#allocation3], 1

</llo_original>
